<compile_context>
chip_gen: v7x
topology: tpu7x:2x2x1
jax: 0.10.0
libtpu: 0.0.40
codegen_flags: <defaults>
</compile_context>

<pallas_src>
import functools

import jax
import jax.numpy as jnp
from jax.experimental import pallas as pl
from jax.experimental.pallas import tpu as pltpu


NUM_SPLITS = 2  # leading "parallel" grid axis: 2 TensorCores on v7x; harmless on v5e/v6e.


def _cdiv(a, b):
    return -(-a // b)


def _round_up(x, m):
    return _cdiv(x, m) * m


def _pow_int_or_float(x, gamma):
    """x**gamma without the EUP log/exp pow path when gamma is a small integer."""
    g = float(gamma)
    if g == int(g) and g >= 0:
        gi = int(g)
        if gi == 0:
            return jnp.ones_like(x)
        out = x
        for _ in range(gi - 1):
            out = out * x
        return out
    return x ** g  # non-integer gamma: falls back to exp(g*log(x)) on the EUP


def _focal_loss_kernel(n_ref, logits_ref, targets_ref, out_ref, *,
                       alpha, gamma, cols, num_tiles, tiles_per_split):
    p = pl.program_id(0)            # megacore split (v7x); serial loop elsewhere
    i = pl.program_id(1)            # batch-tile index within this split
    gt = p * tiles_per_split + i    # global tile index
    n_true = n_ref[0]               # SMEM scalar: true batch size

    @pl.when(i == 0)
    def _init():
        out_ref[...] = jnp.zeros_like(out_ref)

    @pl.when(gt < num_tiles)
    def _accumulate():
        x = logits_ref[...].astype(jnp.float32)     # (C, 8, T), upcast in-kernel
        tgt = targets_ref[...]                      # (8, T) int32
        c, _, t = x.shape

        # Class-axis max as element-wise VPU maxes over the C leading slabs.
        m = x[0]
        for k in range(1, c):
            m = jnp.maximum(m, x[k])                # (8, T)

        # Fused per-class pass: sum of exp, plus gather of shifted/exp at the
        # target class via unrolled compare+select (no iota/onehot, no XLU).
        sum_exp = jnp.zeros_like(m)
        tgt_shifted = jnp.zeros_like(m)
        tgt_exp = jnp.zeros_like(m)
        for k in range(c):
            sh = x[k] - m
            e = jnp.exp(sh)
            sum_exp = sum_exp + e
            sel = tgt == k
            tgt_shifted = tgt_shifted + jnp.where(sel, sh, 0.0)
            tgt_exp = tgt_exp + jnp.where(sel, e, 0.0)

        ce = jnp.log(sum_exp) - tgt_shifted         # (8, T), >= 0
        # Reuse exp(shifted) for pt: saves one full EUP exp vs exp(-ce).
        pt = tgt_exp / sum_exp
        one_minus_pt = jnp.maximum(1.0 - pt, 0.0)   # clamp fp round-off
        focal = alpha * _pow_int_or_float(one_minus_pt, gamma) * ce

        # Mask (select, applied BEFORE accumulation):
        #   * lanes past the true column count (non-divisible last tile holds
        #     unspecified data),
        #   * batch rows past n_true (batch padded up to a multiple of 8).
        lane = jax.lax.broadcasted_iota(jnp.int32, (8, t), 1)
        sub = jax.lax.broadcasted_iota(jnp.int32, (8, t), 0)
        col = gt * t + lane
        valid = (col < cols) & (sub * cols + col < n_true)
        focal = jnp.where(valid, focal, 0.0)

        out_ref[...] += focal                       # resident (8, T) accumulator


@functools.partial(jax.jit, static_argnames=("alpha", "gamma", "tile"))
def focal_loss(logits, targets, alpha=1.0, gamma=2.0, tile=None):
    """logits: (N, C) float, targets: (N,) int -> scalar float32 focal loss.

    Note: alpha is a single scalar applied to every sample, exactly as in the
    reference PyTorch module (not a per-class alpha_t).
    """
    n, c = logits.shape

    # Batch axis -> (8 sublanes, cols lanes).  Pad batch only to a multiple of 8
    # (<= 7 rows); under jit the pad + transpose + reshape fuse into one copy.
    # TODO(synk): have the producing layer emit logits directly in (C, 8, N/8)
    # layout to remove this copy entirely (biggest remaining HBM cost on v5e).
    n8 = _round_up(n, 8)
    cols = n8 // 8
    lp = logits if n8 == n else jnp.pad(logits, ((0, n8 - n), (0, 0)))
    logits_3d = jnp.transpose(lp).reshape(c, 8, cols)
    t32 = targets.astype(jnp.int32)
    t32 = t32 if n8 == n else jnp.pad(t32, (0, n8 - n))
    targets_2d = t32.reshape(8, cols)

    # Lane tile: full width when small; otherwise split across NUM_SPLITS and
    # hard-cap at 2048 lanes (16K samples/block; ~1-2 MiB VMEM incl. f32
    # temporaries -> well inside v7x's 32 MiB scoped VMEM, and 512+ lane tiles
    # already reach ~85% of HBM roofline).
    if tile is None:
        tile = cols if cols <= 128 else min(2048, _round_up(_cdiv(cols, NUM_SPLITS), 128))
    else:
        tile = cols if cols <= 128 else min(_round_up(int(tile), 128), cols)
    num_tiles = _cdiv(cols, tile)
    tiles_per_split = _cdiv(num_tiles, NUM_SPLITS)

    kernel = functools.partial(
        _focal_loss_kernel, alpha=float(alpha), gamma=float(gamma),
        cols=cols, num_tiles=num_tiles, tiles_per_split=tiles_per_split)

    def tile_idx(p, i):
        # Clamp so out-of-range programs (odd tile counts) issue in-bounds DMAs;
        # their compute is skipped inside the kernel via pl.when(gt < num_tiles).
        return jnp.minimum(p * tiles_per_split + i, num_tiles - 1)

    partials = pl.pallas_call(
        kernel,
        out_shape=jax.ShapeDtypeStruct((NUM_SPLITS * 8, tile), jnp.float32),
        grid_spec=pltpu.PrefetchScalarGridSpec(
            num_scalar_prefetch=1,                   # n_true lives in SMEM
            grid=(NUM_SPLITS, tiles_per_split),
            in_specs=[
                # TODO(synk): on v5e, if a trace shows exposed DMA, add
                # pipeline_mode=pl.Buffered(3) to the logits spec.
                pl.BlockSpec((c, 8, tile), lambda p, i, n_ref: (0, 0, tile_idx(p, i))),
                pl.BlockSpec((8, tile), lambda p, i, n_ref: (0, tile_idx(p, i))),
            ],
            out_specs=pl.BlockSpec((8, tile), lambda p, i, n_ref: (p, 0)),
        ),
        compiler_params=pltpu.CompilerParams(
            dimension_semantics=("parallel", "arbitrary"),
        ),
    )(jnp.array([n], dtype=jnp.int32), logits_3d, targets_2d)

    # Single cross-lane/sublane reduce + mean on the tiny (16, tile) result.
    return jnp.sum(partials) / n


def _focal_loss_ref(logits, targets, alpha=1.0, gamma=2.0):
    logp = jax.nn.log_softmax(logits.astype(jnp.float32), axis=-1)
    ce = -jnp.take_along_axis(logp, targets.astype(jnp.int32)[:, None], axis=-1)[:, 0]
    pt = jnp.exp(-ce)
    return jnp.mean(alpha * (1.0 - pt) ** gamma * ce)


if __name__ == "__main__":
    key = jax.random.PRNGKey(0)
    k1, k2, k3, k4 = jax.random.split(key, 4)

    # Small case consistent with the module: 8 samples, 8 emotion classes.
    N, C = 8, 8
    logits = jax.random.normal(k1, (N, C), dtype=jnp.float32)
    targets = jax.random.randint(k2, (N,), 0, C, dtype=jnp.int32)

    loss = focal_loss(logits, targets, alpha=1.0, gamma=2.0)
    jax.block_until_ready(loss)
    ref = _focal_loss_ref(logits, targets, alpha=1.0, gamma=2.0)
    assert jnp.allclose(loss, ref, atol=1e-4, rtol=1e-4), (loss, ref)

    # Second case: N not a multiple of 8, multiple tiles with a non-divisible
    # last block (exercises batch-row padding, garbage-lane masking, and the
    # 2-way parallel split with per-split partial sums).
    N2, C2 = 1999, 8
    logits2 = jax.random.normal(k3, (N2, C2), dtype=jnp.float32)
    targets2 = jax.random.randint(k4, (N2,), 0, C2, dtype=jnp.int32)

    loss2 = focal_loss(logits2, targets2, alpha=0.5, gamma=2.0)
    jax.block_until_ready(loss2)
    ref2 = _focal_loss_ref(logits2, targets2, alpha=0.5, gamma=2.0)
    assert jnp.allclose(loss2, ref2, atol=1e-4, rtol=1e-4), (loss2, ref2)

    print("KERNEL_OK")
</pallas_src>

<mosaic_0001>
module attributes {stable_mosaic.version = 11 : i64} {
  func.func @_focal_loss_kernel(%arg0: i32, %arg1: i32, %arg2: memref<1xi32, #tpu.memory_space<smem>>, %arg3: memref<8x8x1xf32, #tpu.memory_space<vmem>>, %arg4: memref<8x1xi32, #tpu.memory_space<vmem>>, %arg5: memref<8x1xf32, #tpu.memory_space<vmem>>) attributes {dimension_semantics = [#tpu.dimension_semantics<parallel>, #tpu.dimension_semantics<arbitrary>], iteration_bounds = array<i64: 2, 1>, scalar_prefetch = 1 : i64, scratch_operands = 0 : i64, tpu.core_type = #tpu.core_type<tc>, window_params = [{transform_indices = @transform_0, window_bounds = array<i64: 8, 8, 1>}, {transform_indices = @transform_1, window_bounds = array<i64: 8, 1>}, {transform_indices = @transform_2, window_bounds = array<i64: 8, 1>}]} {
    %c1_i32 = arith.constant 1 : i32
    %0 = arith.muli %arg0, %c1_i32 : i32
    %1 = arith.addi %0, %arg1 : i32
    %c0 = arith.constant 0 : index
    %2 = memref.load %arg2[%c0] : memref<1xi32, #tpu.memory_space<smem>>
    %c0_i32 = arith.constant 0 : i32
    %3 = arith.cmpi eq, %arg1, %c0_i32 : i32
    %4 = arith.extui %3 : i1 to i32
    %c0_i32_0 = arith.constant 0 : i32
    %5 = arith.cmpi ne, %4, %c0_i32_0 : i32
    scf.if %5 {
      %cst = arith.constant 0.000000e+00 : f32
      %9 = vector.broadcast %cst : f32 to vector<8x1xf32>
      %c0_3 = arith.constant 0 : index
      %c0_4 = arith.constant 0 : index
      %10 = vector.load %arg5[%c0_3, %c0_4] : memref<8x1xf32, #tpu.memory_space<vmem>>, vector<8x1xf32>
      tpu.vector_store %arg5[%c0_3, %c0_4], %9 {strides = array<i32>} : memref<8x1xf32, #tpu.memory_space<vmem>>, vector<8x1xf32>,
    } else {
    }
    %c1_i32_1 = arith.constant 1 : i32
    %6 = arith.cmpi slt, %1, %c1_i32_1 : i32
    %7 = arith.extui %6 : i1 to i32
    %c0_i32_2 = arith.constant 0 : i32
    %8 = arith.cmpi ne, %7, %c0_i32_2 : i32
    scf.if %8 {
      %c0_3 = arith.constant 0 : index
      %c0_4 = arith.constant 0 : index
      %c0_5 = arith.constant 0 : index
      %9 = vector.load %arg3[%c0_3, %c0_4, %c0_5] : memref<8x8x1xf32, #tpu.memory_space<vmem>>, vector<8x8x1xf32>
      %c0_6 = arith.constant 0 : index
      %c0_7 = arith.constant 0 : index
      %10 = vector.load %arg4[%c0_6, %c0_7] : memref<8x1xi32, #tpu.memory_space<vmem>>, vector<8x1xi32>
      %11 = vector.extract_strided_slice %9 {offsets = [0, 0, 0], sizes = [1, 8, 1], strides = [1, 1, 1]} : vector<8x8x1xf32> to vector<1x8x1xf32>
      %12 = vector.shape_cast %11 : vector<1x8x1xf32> to vector<8x1xf32>
      %13 = vector.extract_strided_slice %9 {offsets = [1, 0, 0], sizes = [1, 8, 1], strides = [1, 1, 1]} : vector<8x8x1xf32> to vector<1x8x1xf32>
      %14 = vector.shape_cast %13 : vector<1x8x1xf32> to vector<8x1xf32>
      %15 = arith.maximumf %12, %14 : vector<8x1xf32>
      %16 = vector.extract_strided_slice %9 {offsets = [2, 0, 0], sizes = [1, 8, 1], strides = [1, 1, 1]} : vector<8x8x1xf32> to vector<1x8x1xf32>
      %17 = vector.shape_cast %16 : vector<1x8x1xf32> to vector<8x1xf32>
      %18 = arith.maximumf %15, %17 : vector<8x1xf32>
      %19 = vector.extract_strided_slice %9 {offsets = [3, 0, 0], sizes = [1, 8, 1], strides = [1, 1, 1]} : vector<8x8x1xf32> to vector<1x8x1xf32>
      %20 = vector.shape_cast %19 : vector<1x8x1xf32> to vector<8x1xf32>
      %21 = arith.maximumf %18, %20 : vector<8x1xf32>
      %22 = vector.extract_strided_slice %9 {offsets = [4, 0, 0], sizes = [1, 8, 1], strides = [1, 1, 1]} : vector<8x8x1xf32> to vector<1x8x1xf32>
      %23 = vector.shape_cast %22 : vector<1x8x1xf32> to vector<8x1xf32>
      %24 = arith.maximumf %21, %23 : vector<8x1xf32>
      %25 = vector.extract_strided_slice %9 {offsets = [5, 0, 0], sizes = [1, 8, 1], strides = [1, 1, 1]} : vector<8x8x1xf32> to vector<1x8x1xf32>
      %26 = vector.shape_cast %25 : vector<1x8x1xf32> to vector<8x1xf32>
      %27 = arith.maximumf %24, %26 : vector<8x1xf32>
      %28 = vector.extract_strided_slice %9 {offsets = [6, 0, 0], sizes = [1, 8, 1], strides = [1, 1, 1]} : vector<8x8x1xf32> to vector<1x8x1xf32>
      %29 = vector.shape_cast %28 : vector<1x8x1xf32> to vector<8x1xf32>
      %30 = arith.maximumf %27, %29 : vector<8x1xf32>
      %31 = vector.extract_strided_slice %9 {offsets = [7, 0, 0], sizes = [1, 8, 1], strides = [1, 1, 1]} : vector<8x8x1xf32> to vector<1x8x1xf32>
      %32 = vector.shape_cast %31 : vector<1x8x1xf32> to vector<8x1xf32>
      %33 = arith.maximumf %30, %32 : vector<8x1xf32>
      %cst = arith.constant 0.000000e+00 : f32
      %34 = vector.broadcast %cst : f32 to vector<8x1xf32>
      %cst_8 = arith.constant 0.000000e+00 : f32
      %35 = vector.broadcast %cst_8 : f32 to vector<8x1xf32>
      %cst_9 = arith.constant 0.000000e+00 : f32
      %36 = vector.broadcast %cst_9 : f32 to vector<8x1xf32>
      %37 = vector.extract_strided_slice %9 {offsets = [0, 0, 0], sizes = [1, 8, 1], strides = [1, 1, 1]} : vector<8x8x1xf32> to vector<1x8x1xf32>
      %38 = vector.shape_cast %37 : vector<1x8x1xf32> to vector<8x1xf32>
      %39 = arith.subf %38, %33 : vector<8x1xf32>
      %40 = math.exp %39 : vector<8x1xf32>
      %41 = arith.addf %34, %40 : vector<8x1xf32>
      %c0_i32_10 = arith.constant 0 : i32
      %42 = vector.broadcast %c0_i32_10 : i32 to vector<8x1xi32>
      %43 = arith.cmpi eq, %10, %42 : vector<8x1xi32>
      %cst_11 = arith.constant 0.000000e+00 : f32
      %44 = vector.broadcast %cst_11 : f32 to vector<8x1xf32>
      %45 = arith.select %43, %39, %44 : vector<8x1xi1>, vector<8x1xf32>
      %46 = arith.addf %35, %45 : vector<8x1xf32>
      %cst_12 = arith.constant 0.000000e+00 : f32
      %47 = vector.broadcast %cst_12 : f32 to vector<8x1xf32>
      %48 = arith.select %43, %40, %47 : vector<8x1xi1>, vector<8x1xf32>
      %49 = arith.addf %36, %48 : vector<8x1xf32>
      %50 = vector.extract_strided_slice %9 {offsets = [1, 0, 0], sizes = [1, 8, 1], strides = [1, 1, 1]} : vector<8x8x1xf32> to vector<1x8x1xf32>
      %51 = vector.shape_cast %50 : vector<1x8x1xf32> to vector<8x1xf32>
      %52 = arith.subf %51, %33 : vector<8x1xf32>
      %53 = math.exp %52 : vector<8x1xf32>
      %54 = arith.addf %41, %53 : vector<8x1xf32>
      %c1_i32_13 = arith.constant 1 : i32
      %55 = vector.broadcast %c1_i32_13 : i32 to vector<8x1xi32>
      %56 = arith.cmpi eq, %10, %55 : vector<8x1xi32>
      %cst_14 = arith.constant 0.000000e+00 : f32
      %57 = vector.broadcast %cst_14 : f32 to vector<8x1xf32>
      %58 = arith.select %56, %52, %57 : vector<8x1xi1>, vector<8x1xf32>
      %59 = arith.addf %46, %58 : vector<8x1xf32>
      %cst_15 = arith.constant 0.000000e+00 : f32
      %60 = vector.broadcast %cst_15 : f32 to vector<8x1xf32>
      %61 = arith.select %56, %53, %60 : vector<8x1xi1>, vector<8x1xf32>
      %62 = arith.addf %49, %61 : vector<8x1xf32>
      %63 = vector.extract_strided_slice %9 {offsets = [2, 0, 0], sizes = [1, 8, 1], strides = [1, 1, 1]} : vector<8x8x1xf32> to vector<1x8x1xf32>
      %64 = vector.shape_cast %63 : vector<1x8x1xf32> to vector<8x1xf32>
      %65 = arith.subf %64, %33 : vector<8x1xf32>
      %66 = math.exp %65 : vector<8x1xf32>
      %67 = arith.addf %54, %66 : vector<8x1xf32>
      %c2_i32 = arith.constant 2 : i32
      %68 = vector.broadcast %c2_i32 : i32 to vector<8x1xi32>
      %69 = arith.cmpi eq, %10, %68 : vector<8x1xi32>
      %cst_16 = arith.constant 0.000000e+00 : f32
      %70 = vector.broadcast %cst_16 : f32 to vector<8x1xf32>
      %71 = arith.select %69, %65, %70 : vector<8x1xi1>, vector<8x1xf32>
      %72 = arith.addf %59, %71 : vector<8x1xf32>
      %cst_17 = arith.constant 0.000000e+00 : f32
      %73 = vector.broadcast %cst_17 : f32 to vector<8x1xf32>
      %74 = arith.select %69, %66, %73 : vector<8x1xi1>, vector<8x1xf32>
      %75 = arith.addf %62, %74 : vector<8x1xf32>
      %76 = vector.extract_strided_slice %9 {offsets = [3, 0, 0], sizes = [1, 8, 1], strides = [1, 1, 1]} : vector<8x8x1xf32> to vector<1x8x1xf32>
      %77 = vector.shape_cast %76 : vector<1x8x1xf32> to vector<8x1xf32>
      %78 = arith.subf %77, %33 : vector<8x1xf32>
      %79 = math.exp %78 : vector<8x1xf32>
      %80 = arith.addf %67, %79 : vector<8x1xf32>
      %c3_i32 = arith.constant 3 : i32
      %81 = vector.broadcast %c3_i32 : i32 to vector<8x1xi32>
      %82 = arith.cmpi eq, %10, %81 : vector<8x1xi32>
      %cst_18 = arith.constant 0.000000e+00 : f32
      %83 = vector.broadcast %cst_18 : f32 to vector<8x1xf32>
      %84 = arith.select %82, %78, %83 : vector<8x1xi1>, vector<8x1xf32>
      %85 = arith.addf %72, %84 : vector<8x1xf32>
      %cst_19 = arith.constant 0.000000e+00 : f32
      %86 = vector.broadcast %cst_19 : f32 to vector<8x1xf32>
      %87 = arith.select %82, %79, %86 : vector<8x1xi1>, vector<8x1xf32>
      %88 = arith.addf %75, %87 : vector<8x1xf32>
      %89 = vector.extract_strided_slice %9 {offsets = [4, 0, 0], sizes = [1, 8, 1], strides = [1, 1, 1]} : vector<8x8x1xf32> to vector<1x8x1xf32>
      %90 = vector.shape_cast %89 : vector<1x8x1xf32> to vector<8x1xf32>
      %91 = arith.subf %90, %33 : vector<8x1xf32>
      %92 = math.exp %91 : vector<8x1xf32>
      %93 = arith.addf %80, %92 : vector<8x1xf32>
      %c4_i32 = arith.constant 4 : i32
      %94 = vector.broadcast %c4_i32 : i32 to vector<8x1xi32>
      %95 = arith.cmpi eq, %10, %94 : vector<8x1xi32>
      %cst_20 = arith.constant 0.000000e+00 : f32
      %96 = vector.broadcast %cst_20 : f32 to vector<8x1xf32>
      %97 = arith.select %95, %91, %96 : vector<8x1xi1>, vector<8x1xf32>
      %98 = arith.addf %85, %97 : vector<8x1xf32>
      %cst_21 = arith.constant 0.000000e+00 : f32
      %99 = vector.broadcast %cst_21 : f32 to vector<8x1xf32>
      %100 = arith.select %95, %92, %99 : vector<8x1xi1>, vector<8x1xf32>
      %101 = arith.addf %88, %100 : vector<8x1xf32>
      %102 = vector.extract_strided_slice %9 {offsets = [5, 0, 0], sizes = [1, 8, 1], strides = [1, 1, 1]} : vector<8x8x1xf32> to vector<1x8x1xf32>
      %103 = vector.shape_cast %102 : vector<1x8x1xf32> to vector<8x1xf32>
      %104 = arith.subf %103, %33 : vector<8x1xf32>
      %105 = math.exp %104 : vector<8x1xf32>
      %106 = arith.addf %93, %105 : vector<8x1xf32>
      %c5_i32 = arith.constant 5 : i32
      %107 = vector.broadcast %c5_i32 : i32 to vector<8x1xi32>
      %108 = arith.cmpi eq, %10, %107 : vector<8x1xi32>
      %cst_22 = arith.constant 0.000000e+00 : f32
      %109 = vector.broadcast %cst_22 : f32 to vector<8x1xf32>
      %110 = arith.select %108, %104, %109 : vector<8x1xi1>, vector<8x1xf32>
      %111 = arith.addf %98, %110 : vector<8x1xf32>
      %cst_23 = arith.constant 0.000000e+00 : f32
      %112 = vector.broadcast %cst_23 : f32 to vector<8x1xf32>
      %113 = arith.select %108, %105, %112 : vector<8x1xi1>, vector<8x1xf32>
      %114 = arith.addf %101, %113 : vector<8x1xf32>
      %115 = vector.extract_strided_slice %9 {offsets = [6, 0, 0], sizes = [1, 8, 1], strides = [1, 1, 1]} : vector<8x8x1xf32> to vector<1x8x1xf32>
      %116 = vector.shape_cast %115 : vector<1x8x1xf32> to vector<8x1xf32>
      %117 = arith.subf %116, %33 : vector<8x1xf32>
      %118 = math.exp %117 : vector<8x1xf32>
      %119 = arith.addf %106, %118 : vector<8x1xf32>
      %c6_i32 = arith.constant 6 : i32
      %120 = vector.broadcast %c6_i32 : i32 to vector<8x1xi32>
      %121 = arith.cmpi eq, %10, %120 : vector<8x1xi32>
      %cst_24 = arith.constant 0.000000e+00 : f32
      %122 = vector.broadcast %cst_24 : f32 to vector<8x1xf32>
      %123 = arith.select %121, %117, %122 : vector<8x1xi1>, vector<8x1xf32>
      %124 = arith.addf %111, %123 : vector<8x1xf32>
      %cst_25 = arith.constant 0.000000e+00 : f32
      %125 = vector.broadcast %cst_25 : f32 to vector<8x1xf32>
      %126 = arith.select %121, %118, %125 : vector<8x1xi1>, vector<8x1xf32>
      %127 = arith.addf %114, %126 : vector<8x1xf32>
      %128 = vector.extract_strided_slice %9 {offsets = [7, 0, 0], sizes = [1, 8, 1], strides = [1, 1, 1]} : vector<8x8x1xf32> to vector<1x8x1xf32>
      %129 = vector.shape_cast %128 : vector<1x8x1xf32> to vector<8x1xf32>
      %130 = arith.subf %129, %33 : vector<8x1xf32>
      %131 = math.exp %130 : vector<8x1xf32>
      %132 = arith.addf %119, %131 : vector<8x1xf32>
      %c7_i32 = arith.constant 7 : i32
      %133 = vector.broadcast %c7_i32 : i32 to vector<8x1xi32>
      %134 = arith.cmpi eq, %10, %133 : vector<8x1xi32>
      %cst_26 = arith.constant 0.000000e+00 : f32
      %135 = vector.broadcast %cst_26 : f32 to vector<8x1xf32>
      %136 = arith.select %134, %130, %135 : vector<8x1xi1>, vector<8x1xf32>
      %137 = arith.addf %124, %136 : vector<8x1xf32>
      %cst_27 = arith.constant 0.000000e+00 : f32
      %138 = vector.broadcast %cst_27 : f32 to vector<8x1xf32>
      %139 = arith.select %134, %131, %138 : vector<8x1xi1>, vector<8x1xf32>
      %140 = arith.addf %127, %139 : vector<8x1xf32>
      %141 = math.log %132 : vector<8x1xf32>
      %142 = arith.subf %141, %137 : vector<8x1xf32>
      %143 = arith.divf %140, %132 : vector<8x1xf32>
      %cst_28 = arith.constant 1.000000e+00 : f32
      %144 = vector.broadcast %cst_28 : f32 to vector<8x1xf32>
      %145 = arith.subf %144, %143 : vector<8x1xf32>
      %cst_29 = arith.constant 0.000000e+00 : f32
      %146 = vector.broadcast %cst_29 : f32 to vector<8x1xf32>
      %147 = arith.maximumf %145, %146 : vector<8x1xf32>
      %148 = arith.mulf %147, %147 : vector<8x1xf32>
      %cst_30 = arith.constant 1.000000e+00 : f32
      %149 = vector.broadcast %cst_30 : f32 to vector<8x1xf32>
      %150 = arith.mulf %149, %148 : vector<8x1xf32>
      %151 = arith.mulf %150, %142 : vector<8x1xf32>
      %152 = tpu.iota {dimensions = array<i32: 1>} : vector<8x1xi32>
      %153 = tpu.iota {dimensions = array<i32: 0>} : vector<8x1xi32>
      %c1_i32_31 = arith.constant 1 : i32
      %154 = arith.muli %1, %c1_i32_31 : i32
      %155 = vector.broadcast %154 : i32 to vector<8x1xi32>
      %156 = arith.addi %155, %152 : vector<8x1xi32>
      %c1_i32_32 = arith.constant 1 : i32
      %157 = vector.broadcast %c1_i32_32 : i32 to vector<8x1xi32>
      %158 = arith.cmpi slt, %156, %157 : vector<8x1xi32>
      %c1_i32_33 = arith.constant 1 : i32
      %159 = vector.broadcast %c1_i32_33 : i32 to vector<8x1xi32>
      %160 = arith.muli %153, %159 : vector<8x1xi32>
      %161 = arith.addi %160, %156 : vector<8x1xi32>
      %162 = vector.broadcast %2 : i32 to vector<8x1xi32>
      %163 = arith.cmpi slt, %161, %162 : vector<8x1xi32>
      %164 = arith.andi %158, %163 : vector<8x1xi1>
      %cst_34 = arith.constant 0.000000e+00 : f32
      %165 = vector.broadcast %cst_34 : f32 to vector<8x1xf32>
      %166 = arith.select %164, %151, %165 : vector<8x1xi1>, vector<8x1xf32>
      %c0_35 = arith.constant 0 : index
      %c0_36 = arith.constant 0 : index
      %167 = vector.load %arg5[%c0_35, %c0_36] : memref<8x1xf32, #tpu.memory_space<vmem>>, vector<8x1xf32>
      %168 = arith.addf %167, %166 : vector<8x1xf32>
      %c0_37 = arith.constant 0 : index
      %c0_38 = arith.constant 0 : index
      %169 = vector.load %arg5[%c0_37, %c0_38] : memref<8x1xf32, #tpu.memory_space<vmem>>, vector<8x1xf32>
      tpu.vector_store %arg5[%c0_37, %c0_38], %168 {strides = array<i32>} : memref<8x1xf32, #tpu.memory_space<vmem>>, vector<8x1xf32>,
    } else {
    }
    return
  }
  func.func @transform_0(%arg0: i32, %arg1: i32, %arg2: memref<1xi32, #tpu.memory_space<smem>>) -> (i32, i32, i32) {
    %c1_i32 = arith.constant 1 : i32
    %0 = arith.muli %arg0, %c1_i32 : i32
    %1 = arith.addi %0, %arg1 : i32
    %c0_i32 = arith.constant 0 : i32
    %2 = arith.minsi %1, %c0_i32 : i32
    %c0_i32_0 = arith.constant 0 : i32
    %c0_i32_1 = arith.constant 0 : i32
    %c0_i32_2 = arith.constant 0 : i32
    return %c0_i32_0, %c0_i32_1, %2 : i32, i32, i32
  }
  func.func @transform_1(%arg0: i32, %arg1: i32, %arg2: memref<1xi32, #tpu.memory_space<smem>>) -> (i32, i32) {
    %c1_i32 = arith.constant 1 : i32
    %0 = arith.muli %arg0, %c1_i32 : i32
    %1 = arith.addi %0, %arg1 : i32
    %c0_i32 = arith.constant 0 : i32
    %2 = arith.minsi %1, %c0_i32 : i32
    %c0_i32_0 = arith.constant 0 : i32
    %c0_i32_1 = arith.constant 0 : i32
    return %c0_i32_0, %2 : i32, i32
  }
  func.func @transform_2(%arg0: i32, %arg1: i32, %arg2: memref<1xi32, #tpu.memory_space<smem>>) -> (i32, i32) {
    %c0_i32 = arith.constant 0 : i32
    %c0_i32_0 = arith.constant 0 : i32
    return %arg0, %c0_i32 : i32, i32
  }
}

</mosaic_0001>

<llo_original>
// kernel: focal_loss.1
$region0: #{focal_loss.1}
  #allocation0 [shape = 'u32[]', space=smem, size = 0x4, offset = 0x4, fixed_abs, tag = 'smem constant byte address 0x4 - core index']
  #allocation1 [shape = 'u32[144,128]{1,0:T(1,128)}', space=vmem, size = 0x12000, scoped, tag = 'internal scratch']
  #allocation2 [shape = 's32[1]{0}', space=sflag, size = 0x4, scoped, tag = 'scoped memory for focal_loss.1']
  #allocation3 [shape = 's32[1]{0:T(128)S(6)}', space=smem, size = 0x200, scoped, tag = 'prefetched SMEM operand 0']
  %s0 = inlined_call_operand.<no memory space> [shape: s32[1], index: 0, kind: input, shape index: {}]
  %s1 = inlined_call_operand.vmem [shape: f32[8,8,1], index: 1, kind: input, shape index: {}]
  %s2 = inlined_call_operand.vmem [shape: s32[8,1], index: 2, kind: input, shape index: {}]
  %s3 = inlined_call_operand.vmem [shape: f32[16,1], index: 3, kind: output, shape index: {}]
  %s4 = sld [smem:[#allocation0]]
  $region49: #{focal_loss.1} parent=0
    _
  %s6 = ssub.s32 1, %s4
  %s7 = scalar_select 0, %s6, %s4
  %8 = sst [smem:[#allocation3]] %s0
  loop: start=0, step=1, limit=4
  $region2: #{focal_loss.1} parent=0 // loop_pre_header
    _
  $region3: #{focal_loss.1} parent=0 // loop_header
    %s10 = sphi 0, %s14
    %p11 = scmp.ge.s32.totalorder %s10, 4
    %s17 = sphi 0, %s29
    %s18 = sphi 0, %s25
    %s19 = sphi 0, %s17
    %s20 = sphi 0, %s18
    %s21 = sphi 0, %s19
    %s22 = sphi 0, %s20
    %s38 = sphi 0, %s40
    %s41 = sphi 0, %s38
    %s42 = sphi 0, %s41
    %s58 = sphi 0, %s42
    %s70 = sphi 0, %s72
    %s73 = sphi 0, %s70
    %s74 = sphi 0, %s73
    %s90 = sphi 0, %s74
    %s96 = sphi 0, %s98
    %s99 = sphi 0, %s96
    %s100 = sphi 0, %s99
    %s116 = sphi 0, %s100
  $region4: #{focal_loss.1} parent=0 // loop_header_branch
    %13 = sbr.rel (%p11) target = $region8
  $region5: #{focal_loss.1} parent=0 // loop_body
    %s15 = ssub.s32 %s10, 1
    %s16 = ssub.s32 %s10, 2
    %s23 = sadd.s32 1, %s18
    %p24 = scmp.ge.s32.totalorder %s23, 1
    %s25 = scalar_select %p24, 0, %s23
    %s26 = sadd.s32 1, %s17
    %s27 = scalar_select %p24, %s26, %s17
    %p28 = scmp.ge.s32.totalorder %s27, 2
    %s29 = scalar_select %p28, 0, %s27
    %s30 = sadd.s32 %s17, %s18
    %p31 = scmp.lt.s32.totalorder %s30, 0
    %s32 = scalar_select %p31, %s30, 0
    %s33 = sadd.s32 %s29, %s25
    %p34 = scmp.lt.s32.totalorder %s33, 0
    %s35 = scalar_select %p34, %s33, 0
    %s36 = ssub.s32 %s32, %s35
    %p37 = scmp.eq.s32.totalorder %s36, 0
    %s39 = sadd.s32 %s38, 1
    %s40 = scalar_select %p37, %s38, %s39
    %p43 = pneg %p37
    %p44 = scmp.eq.s32.totalorder %s10, 1
    %p45 = por %p43, %p44
    %p46 = scmp.ne.s32.totalorder %s38, %s41
    %p47 = scmp.eq.s32.totalorder %s10, 0
    %p48 = por %p46, %p47
    %p49 = scmp.ne.s32.totalorder %s38, %s41
    %p50 = scmp.eq.s32.totalorder %s15, 1
    %p51 = por %p49, %p50
    %p52 = scmp.ne.s32.totalorder %s41, %s42
    %p53 = scmp.eq.s32.totalorder %s15, 0
    %p54 = por %p52, %p53
    %p55 = scmp.ne.s32.totalorder %s41, %s42
    %p56 = scmp.eq.s32.totalorder %s16, 1
    %p57 = por %p55, %p56
    %p59 = scmp.ne.s32.totalorder %s42, %s58
    %p60 = scmp.eq.s32.totalorder %s16, 0
    %p61 = por %p59, %p60
    %s62 = sadd.s32 %s17, %s18
    %p63 = scmp.lt.s32.totalorder %s62, 0
    %s64 = scalar_select %p63, %s62, 0
    %s65 = sadd.s32 %s29, %s25
    %p66 = scmp.lt.s32.totalorder %s65, 0
    %s67 = scalar_select %p66, %s65, 0
    %s68 = ssub.s32 %s64, %s67
    %p69 = scmp.eq.s32.totalorder %s68, 0
    %s71 = sadd.s32 %s70, 1
    %s72 = scalar_select %p69, %s70, %s71
    %p75 = pneg %p69
    %p76 = scmp.eq.s32.totalorder %s10, 1
    %p77 = por %p75, %p76
    %p78 = scmp.ne.s32.totalorder %s70, %s73
    %p79 = scmp.eq.s32.totalorder %s10, 0
    %p80 = por %p78, %p79
    %p81 = scmp.ne.s32.totalorder %s70, %s73
    %p82 = scmp.eq.s32.totalorder %s15, 1
    %p83 = por %p81, %p82
    %p84 = scmp.ne.s32.totalorder %s73, %s74
    %p85 = scmp.eq.s32.totalorder %s15, 0
    %p86 = por %p84, %p85
    %p87 = scmp.ne.s32.totalorder %s73, %s74
    %p88 = scmp.eq.s32.totalorder %s16, 1
    %p89 = por %p87, %p88
    %p91 = scmp.ne.s32.totalorder %s74, %s90
    %p92 = scmp.eq.s32.totalorder %s16, 0
    %p93 = por %p91, %p92
    %s94 = ssub.s32 %s17, %s29
    %p95 = scmp.eq.s32.totalorder %s94, 0
    %s97 = sadd.s32 %s96, 1
    %s98 = scalar_select %p95, %s96, %s97
    %p101 = pneg %p95
    %p102 = scmp.eq.s32.totalorder %s10, 1
    %p103 = por %p101, %p102
    %p104 = scmp.ne.s32.totalorder %s96, %s99
    %p105 = scmp.eq.s32.totalorder %s10, 0
    %p106 = por %p104, %p105
    %p107 = scmp.ne.s32.totalorder %s96, %s99
    %p108 = scmp.eq.s32.totalorder %s15, 1
    %p109 = por %p107, %p108
    %p110 = scmp.ne.s32.totalorder %s99, %s100
    %p111 = scmp.eq.s32.totalorder %s15, 0
    %p112 = por %p110, %p111
    %p113 = scmp.ne.s32.totalorder %s99, %s100
    %p114 = scmp.eq.s32.totalorder %s16, 1
    %p115 = por %p113, %p114
    %p117 = scmp.ne.s32.totalorder %s100, %s116
    %p118 = scmp.eq.s32.totalorder %s16, 0
    %p119 = por %p117, %p118
    %p120 = scmp.le.s32.totalorder 1, %s10
    %p121 = scmp.lt.s32.totalorder %s10, 3
    %p122 = pnand %p120, %p121
    %p123 = pneg %p122
    // Predicated region
    $region9: #{focal_loss.1} parent=5 // pred_check
      _
    $region10: #{focal_loss.1} parent=5 // pred_check_branch
      %125 = sbr.rel (%p122) target = $region12
    $region11: #{focal_loss.1} parent=5 // pred_region
      %s126 = ssub.s32 %s10, 1
    $region12: #{focal_loss.1} parent=5 // pred_fallthru
      _
    %p127 = scmp.lt.s32.totalorder %s10, 2
    // Predicated region
    $region13: #{focal_loss.1} parent=5 // pred_check
      %p128 = pneg %p127
    $region14: #{focal_loss.1} parent=5 // pred_check_branch
      %130 = sbr.rel (%p128) target = $region16
    $region15: #{focal_loss.1} parent=5 // pred_region
      // Predicated region
      $region17: #{focal_loss.1} parent=15 // pred_check
        %p131 = pneg %p48
      $region18: #{focal_loss.1} parent=15 // pred_check_branch
        %133 = sbr.rel (%p131) target = $region20
      $region19: #{focal_loss.1} parent=15 // pred_region
        %s134 = sadd.s32 %s17, %s18
        %p135 = scmp.lt.s32.totalorder %s134, 0
        %s136 = scalar_select %p135, %s134, 0
        %p137 = scmp.lt.s32.totalorder %s136, 0
        %s138 = scalar_select %p137, %s136, 0
        %s139 = smul.addr %s138, 8
        %s140 = scalar_lea.vmem %s1, %s139
        %s141 = sadd.s32 %s17, %s18
        %p142 = scmp.lt.s32.totalorder %s141, 0
        %s143 = scalar_select %p142, %s141, 0
      $region20: #{focal_loss.1} parent=15 // pred_fallthru
        _
      // Predicated region
      $region21: #{focal_loss.1} parent=15 // pred_check
        %p144 = pneg %p80
      $region22: #{focal_loss.1} parent=15 // pred_check_branch
        %146 = sbr.rel (%p144) target = $region24
      $region23: #{focal_loss.1} parent=15 // pred_region
        %s147 = sadd.s32 %s17, %s18
        %p148 = scmp.lt.s32.totalorder %s147, 0
        %s149 = scalar_select %p148, %s147, 0
        %p150 = scmp.lt.s32.totalorder %s149, 0
        %s151 = scalar_select %p150, %s149, 0
        %s152 = smul.addr %s151, 8
        %s153 = scalar_lea.vmem %s2, %s152
        %s154 = sadd.s32 %s17, %s18
        %p155 = scmp.lt.s32.totalorder %s154, 0
        %s156 = scalar_select %p155, %s154, 0
      $region24: #{focal_loss.1} parent=15 // pred_fallthru
        _
    $region16: #{focal_loss.1} parent=5 // pred_fallthru
      _
    %p157 = scmp.le.s32.totalorder 1, %s10
    %p158 = scmp.lt.s32.totalorder %s10, 3
    %p159 = pnand %p157, %p158
    %p160 = pneg %p159
    // Predicated region
    $region25: #{focal_loss.1} parent=5 // pred_check
      _
    $region26: #{focal_loss.1} parent=5 // pred_check_branch
      %162 = sbr.rel (%p159) target = $region28
    $region27: #{focal_loss.1} parent=5 // pred_region
      %s163 = ssub.s32 %s10, 1
      %s164 = sadd.s32 %s19, %s20
      %p165 = scmp.lt.s32.totalorder %s164, 0
      %s166 = scalar_select %p165, %s164, 0
      %p167 = scmp.lt.s32.totalorder %s166, 0
      %s168 = scalar_select %p167, %s166, 0
      %s169 = smul.addr %s168, 8
      %s170 = scalar_lea.vmem %s1, %s169
      %p171 = pneg %p54
      %p172 = pneg %p51
      %s173 = sadd.s32 %s19, %s20
      %p174 = scmp.lt.s32.totalorder %s173, 0
      %s175 = scalar_select %p174, %s173, 0
      %p176 = scmp.lt.s32.totalorder %s175, 0
      %s177 = scalar_select %p176, %s175, 0
      %s178 = smul.addr %s177, 8
      %s179 = scalar_lea.vmem %s2, %s178
      %p180 = pneg %p86
      %p181 = pneg %p83
      %p182 = pneg %p112
      %p183 = pneg %p109
      %p184 = scmp.lt.s32.totalorder %s19, 1
      %s185 = scalar_select %p184, %s19, 1
      %s186 = smul.addr %s185, 8
      %s187 = scalar_lea.vmem %s3, %s186
      %s188 = sadd.s32 %s19, %s20
      %p189 = scmp.lt.s32.totalorder %s188, 0
      %s190 = scalar_select %p189, %s188, 0
      %p191 = scmp.lt.s32.totalorder %s190, 0
      %s192 = scalar_select %p191, %s190, 0
      %s193 = smul.addr %s192, 8
      %s194 = scalar_lea.vmem %s1, %s193
      %s195 = sadd.s32 %s19, %s20
      %p196 = scmp.lt.s32.totalorder %s195, 0
      %s197 = scalar_select %p196, %s195, 0
      %s198 = sadd.s32 %s19, %s20
      %p199 = scmp.lt.s32.totalorder %s198, 0
      %s200 = scalar_select %p199, %s198, 0
      %p201 = scmp.lt.s32.totalorder %s200, 0
      %s202 = scalar_select %p201, %s200, 0
      %s203 = smul.addr %s202, 8
      %s204 = scalar_lea.vmem %s2, %s203
      %s205 = sadd.s32 %s19, %s20
      %p206 = scmp.lt.s32.totalorder %s205, 0
      %s207 = scalar_select %p206, %s205, 0
      %p208 = scmp.lt.s32.totalorder %s19, 1
      %s209 = scalar_select %p208, %s19, 1
      %s210 = smul.addr %s209, 8
      %s211 = scalar_lea.vmem %s3, %s210
      %s212 = sadd.s32 %s19, %s20
      %s213 = sld [smem:[#allocation3]]
      %p214 = scmp.eq.s32.totalorder %s20, 0
      // Predicated region
      $region29: #{focal_loss.1} parent=27 // pred_check
        %p215 = pneg %p214
      $region30: #{focal_loss.1} parent=27 // pred_check_branch
        %217 = sbr.rel (%p215) target = $region32
      $region31: #{focal_loss.1} parent=27 // pred_region
        %vm218 = vcmask 7168
        %219 = vst.msk [vmem:[%s211] sm:$0xff] %vm218, 0.0
      $region32: #{focal_loss.1} parent=27 // pred_fallthru
        _
      %p220 = scmp.lt.s32.totalorder %s212, 1
      // Predicated region
      $region33: #{focal_loss.1} parent=27 // pred_check
        %p221 = pneg %p220
      $region34: #{focal_loss.1} parent=27 // pred_check_branch
        %223 = sbr.rel (%p221) target = $region36
      $region35: #{focal_loss.1} parent=27 // pred_region
        %v224 = vld [vmem:[%s194] sm:$0xff]
        %v225 = vld [vmem:[%s194 + $0x8] sm:$0xff]
        %v226 = vld [vmem:[%s194 + $0x10] sm:$0xff]
        %v227 = vld [vmem:[%s194 + $0x18] sm:$0xff]
        %v228 = vld [vmem:[%s194 + $0x20] sm:$0xff]
        %v229 = vld [vmem:[%s194 + $0x28] sm:$0xff]
        %v230 = vld [vmem:[%s194 + $0x30] sm:$0xff]
        %v231 = vld [vmem:[%s194 + $0x38] sm:$0xff]
        %v232 = vld [vmem:[%s204] sm:$0xff]
        %v233 = vmax.f32 %v224, %v225
        %v234 = vmax.f32 %v233, %v226
        %v235 = vmax.f32 %v234, %v227
        %v236 = vmax.f32 %v235, %v228
        %v237 = vmax.f32 %v236, %v229
        %v238 = vmax.f32 %v237, %v230
        %v239 = vmax.f32 %v238, %v231
        %v240 = vsub.f32 %v224, %v239
        %v241 = vmul.f32 %v240, 1.442695
        %v242 = vpow.pop %v241
        %v243 = vadd.f32 %v242, 0.0
        %vm244 = vcmp.eq.s32.totalorder %v232, 0
        %v245 = vsel %vm244, %v240, 0.0
        %v246 = vadd.f32 %v245, 0.0
        %v247 = vsel %vm244, %v242, 0.0
        %v248 = vadd.f32 %v247, 0.0
        %v249 = vsub.f32 %v225, %v239
        %v250 = vmul.f32 %v249, 1.442695
        %v251 = vpow.pop %v250
        %v252 = vadd.f32 %v243, %v251
        %vm253 = vcmp.eq.s32.totalorder %v232, 1
        %v254 = vsel %vm253, %v249, 0.0
        %v255 = vadd.f32 %v246, %v254
        %v256 = vsel %vm253, %v251, 0.0
        %v257 = vadd.f32 %v248, %v256
        %v258 = vsub.f32 %v226, %v239
        %v259 = vmul.f32 %v258, 1.442695
        %v260 = vpow.pop %v259
        %v261 = vadd.f32 %v252, %v260
        %vm262 = vcmp.eq.s32.totalorder %v232, 2
        %v263 = vsel %vm262, %v258, 0.0
        %v264 = vadd.f32 %v255, %v263
        %v265 = vsel %vm262, %v260, 0.0
        %v266 = vadd.f32 %v257, %v265
        %v267 = vsub.f32 %v227, %v239
        %v268 = vmul.f32 %v267, 1.442695
        %v269 = vpow.pop %v268
        %v270 = vadd.f32 %v261, %v269
        %vm271 = vcmp.eq.s32.totalorder %v232, 3
        %v272 = vsel %vm271, %v267, 0.0
        %v273 = vadd.f32 %v264, %v272
        %v274 = vsel %vm271, %v269, 0.0
        %v275 = vadd.f32 %v266, %v274
        %v276 = vsub.f32 %v228, %v239
        %v277 = vmul.f32 %v276, 1.442695
        %v278 = vpow.pop %v277
        %v279 = vadd.f32 %v270, %v278
        %vm280 = vcmp.eq.s32.totalorder %v232, 4
        %v281 = vsel %vm280, %v276, 0.0
        %v282 = vadd.f32 %v273, %v281
        %v283 = vsel %vm280, %v278, 0.0
        %v284 = vadd.f32 %v275, %v283
        %v285 = vsub.f32 %v229, %v239
        %v286 = vmul.f32 %v285, 1.442695
        %v287 = vpow.pop %v286
        %v288 = vadd.f32 %v279, %v287
        %vm289 = vcmp.eq.s32.totalorder %v232, 5
        %v290 = vsel %vm289, %v285, 0.0
        %v291 = vadd.f32 %v282, %v290
        %v292 = vsel %vm289, %v287, 0.0
        %v293 = vadd.f32 %v284, %v292
        %v294 = vsub.f32 %v230, %v239
        %v295 = vmul.f32 %v294, 1.442695
        %v296 = vpow.pop %v295
        %v297 = vadd.f32 %v288, %v296
        %vm298 = vcmp.eq.s32.totalorder %v232, 6
        %v299 = vsel %vm298, %v294, 0.0
        %v300 = vadd.f32 %v291, %v299
        %v301 = vsel %vm298, %v296, 0.0
        %v302 = vadd.f32 %v293, %v301
        %v303 = vsub.f32 %v231, %v239
        %v304 = vmul.f32 %v303, 1.442695
        %v305 = vpow.pop %v304
        %v306 = vadd.f32 %v297, %v305
        %vm307 = vcmp.eq.s32.totalorder %v232, 7
        %v308 = vsel %vm307, %v303, 0.0
        %v309 = vadd.f32 %v300, %v308
        %v310 = vsel %vm307, %v305, 0.0
        %v311 = vadd.f32 %v302, %v310
        %v312 = vlog2.pop %v306
        %v313 = vmul.f32 %v312, 0.6931472
        %v314 = vsub.f32 %v313, %v309
        %v315 = vrcp.pop %v306
        %v316 = vmul.f32 %v311, %v315
        %v317 = vsub.f32 1.0, %v316
        %v318 = vmax.f32 %v317, 0.0
        %v319 = vmul.f32 %v318, %v318
        %v320 = vmul.f32 %v319, %v314
        %v321 = vlaneseq
        %v322 = vand.u32 %v321, 127
        %v323 = vlaneseq
        %v324 = vshrl.u32 %v323, 7
        %v325 = vstv %s212
        %v326 = vadd.s32 %v325, %v322
        %vm327 = vcmp.lt.s32.totalorder %v326, 1
        %v328 = vadd.s32 %v324, %v326
        %v329 = vstv %s213
        %vm330 = vcmp.lt.s32.totalorder %v328, %v329
        %vm331 = vmand %vm327, %vm330
        %v332 = vsel %vm331, %v320, 0.0
        %v333 = vld [vmem:[%s211] sm:$0xff]
        %v334 = vadd.f32 %v333, %v332
        %vm335 = vcmask 7168
        %336 = vst.msk [vmem:[%s211] sm:$0xff] %vm335, %v334
      $region36: #{focal_loss.1} parent=27 // pred_fallthru
        _
      %p337 = scmp.lt.s32.totalorder %s19, 1
      %s338 = scalar_select %p337, %s19, 1
      %s339 = smul.addr %s338, 8
      %s340 = scalar_lea.vmem %s3, %s339
      // Predicated region
      $region37: #{focal_loss.1} parent=27 // pred_check
        %p341 = pneg %p109
      $region38: #{focal_loss.1} parent=27 // pred_check_branch
        %343 = sbr.rel (%p341) target = $region40
      $region39: #{focal_loss.1} parent=27 // pred_region
        _
      $region40: #{focal_loss.1} parent=27 // pred_fallthru
        _
    $region28: #{focal_loss.1} parent=5 // pred_fallthru
      _
    %p344 = scmp.le.s32.totalorder 2, %s10
    // Predicated region
    $region41: #{focal_loss.1} parent=5 // pred_check
      %p345 = pneg %p344
    $region42: #{focal_loss.1} parent=5 // pred_check_branch
      %347 = sbr.rel (%p345) target = $region44
    $region43: #{focal_loss.1} parent=5 // pred_region
      %s348 = ssub.s32 %s10, 2
      // Predicated region
      $region45: #{focal_loss.1} parent=43 // pred_check
        %p349 = pneg %p115
      $region46: #{focal_loss.1} parent=43 // pred_check_branch
        %351 = sbr.rel (%p349) target = $region48
      $region47: #{focal_loss.1} parent=43 // pred_region
        %p352 = scmp.lt.s32.totalorder %s21, 1
        %s353 = scalar_select %p352, %s21, 1
        %s354 = smul.addr %s353, 8
        %s355 = scalar_lea.vmem %s3, %s354
      $region48: #{focal_loss.1} parent=43 // pred_fallthru
        _
    $region44: #{focal_loss.1} parent=5 // pred_fallthru
      _
  $region6: #{focal_loss.1} parent=0 // loop_footer
    %s14 = sadd.s32 1, %s10
  $region7: #{focal_loss.1} parent=0 // loop_footer_branch
    %9 = sbr.rel target = $region3
  $region8: #{focal_loss.1} parent=0 // loop_exit
    _

</llo_original>
